<compile_context>
chip_gen: v7x
topology: tpu7x:2x2x1
jax: 0.10.0
libtpu: 0.0.40
codegen_flags: <defaults>
</compile_context>

<pallas_src>
import jax
import jax.numpy as jnp
from jax import lax
from jax.experimental import pallas as pl
from jax.experimental.pallas import tpu as pltpu

_GELU_C = 0.7978845608028654  # sqrt(2/pi)
_F32 = jnp.float32
_BF16 = jnp.bfloat16

_VMEM_LIMIT_CACHE = None


def _vmem_limit_bytes():
    """Scoped VMEM limit derived from the actual chip, with a safe fallback."""
    global _VMEM_LIMIT_CACHE
    if _VMEM_LIMIT_CACHE is None:
        limit = 32 * 1024 * 1024
        try:
            cap = int(getattr(pltpu.get_tpu_info(), "vmem_capacity_bytes", 0))
            if cap > 0:
                # Leave ~16 MiB headroom below physical per-core VMEM
                # (v7x: 64 MiB -> 48 MiB; v5e/v6e: 128 MiB -> capped at 96 MiB).
                limit = max(16 * 1024 * 1024,
                            min(cap - 16 * 1024 * 1024, 96 * 1024 * 1024))
        except Exception:
            pass
        _VMEM_LIMIT_CACHE = limit
    return _VMEM_LIMIT_CACHE


def _pick_seq_tile(S):
    for t in (256, 128):
        if S % t == 0:
            return t
    return S  # small / irregular S: full-extent block


def _pick_kv_tile(S):
    for t in (512, 256, 128):
        if S % t == 0:
            return t
    return S


def _layer_norm_f32(v, g, b, eps=1e-12):
    # Two-pass variance (matches torch LayerNorm numerics; avoids cancellation).
    mu = jnp.mean(v, axis=-1, keepdims=True)
    c = v - mu
    var = jnp.mean(c * c, axis=-1, keepdims=True)
    return c * lax.rsqrt(var + eps) * g + b


# ----------------------------------------------------------------------------
# Kernel 1: fused QKV projection (computed once per token)
# ----------------------------------------------------------------------------
def make_qkv_kernel(pre_layer_norm):
    def kernel(x_ref, g_ref, b_ref, wqkv_ref, bqkv_ref, q_ref, k_ref, v_ref):
        x = x_ref[...].astype(_F32)                       # (TS, H)
        H = x.shape[-1]
        if pre_layer_norm:
            x = _layer_norm_f32(x, g_ref[...].astype(_F32), b_ref[...].astype(_F32))
        # One wide (H, 3H) MXU matmul; bf16 operands, f32 accumulation.
        qkv = jnp.dot(x.astype(_BF16), wqkv_ref[...],
                      preferred_element_type=_F32) + bqkv_ref[...].astype(_F32)
        q_ref[...] = qkv[:, :H].astype(q_ref.dtype)       # scale already folded in
        k_ref[...] = qkv[:, H:2 * H].astype(k_ref.dtype)
        v_ref[...] = qkv[:, 2 * H:].astype(v_ref.dtype)
    return kernel


def qkv_projection(x, p, pre_layer_norm):
    B, S, H = x.shape
    TS = _pick_seq_tile(S)
    out_sds = jax.ShapeDtypeStruct((B, S, H), _BF16)

    def const(shape):
        return pl.BlockSpec(shape, lambda b, si: (0, 0))

    cost = pl.CostEstimate(
        flops=2 * B * S * H * 3 * H,
        transcendentals=0,
        bytes_accessed=2 * B * S * H + 2 * 3 * H * H + 4 * 3 * H + 3 * 2 * B * S * H)

    return pl.pallas_call(
        make_qkv_kernel(pre_layer_norm),
        out_shape=(out_sds, out_sds, out_sds),
        grid=(B, S // TS),
        in_specs=[
            pl.BlockSpec((None, TS, H), lambda b, si: (b, si, 0)),   # x token tile
            const((1, H)), const((1, H)),                            # gamma1, beta1
            const((H, 3 * H)), const((1, 3 * H)),                    # fused wqkv, bqkv
        ],
        out_specs=(
            pl.BlockSpec((None, TS, H), lambda b, si: (b, si, 0)),   # q
            pl.BlockSpec((None, TS, H), lambda b, si: (b, si, 0)),   # k
            pl.BlockSpec((None, TS, H), lambda b, si: (b, si, 0)),   # v
        ),
        compiler_params=pltpu.CompilerParams(
            dimension_semantics=("parallel", "parallel"),
            vmem_limit_bytes=_vmem_limit_bytes()),
        cost_estimate=cost,
    )(x, p["g1"], p["be1"], p["wqkv"], p["bqkv"])


# ----------------------------------------------------------------------------
# Kernel 2: attention (flash-style KV blocking) + out-proj + add&norm + FFN + add&norm
# ----------------------------------------------------------------------------
def make_attn_ffn_kernel(num_heads, pre_layer_norm, kv_block):
    def kernel(x_ref, q_ref, k_ref, v_ref, mask_ref,
               wo_ref, bo_ref, g1_ref, be1_ref,
               wi_ref, bi_ref, w2_ref, b2_ref, g2_ref, be2_ref,
               out_ref):
        TQ, H = q_ref.shape
        S = k_ref.shape[0]
        NH = num_heads
        hd = H // NH
        num_kb = S // kv_block

        xq = x_ref[...].astype(_F32)        # (TQ, H) residual stream
        mask = mask_ref[...].astype(_F32)   # (1, S)  additive key mask

        # Head-major query tile (NH, TQ, hd); 1/sqrt(hd) folded into wq already.
        q3 = jnp.transpose(q_ref[...].reshape(TQ, NH, hd), (1, 0, 2))

        # Online softmax over KV blocks: scores bounded to (NH, TQ, kv_block) f32.
        m = jnp.full((NH, TQ, 1), -jnp.inf, _F32)
        l = jnp.zeros((NH, TQ, 1), _F32)
        acc = jnp.zeros((NH, TQ, hd), _F32)
        for kb in range(num_kb):                      # static, unrolled
            lo = kb * kv_block
            k3 = jnp.transpose(
                k_ref[pl.ds(lo, kv_block), :].reshape(kv_block, NH, hd), (1, 0, 2))
            v3 = jnp.transpose(
                v_ref[pl.ds(lo, kv_block), :].reshape(kv_block, NH, hd), (1, 0, 2))
            s = jnp.einsum('nqd,nkd->nqk', q3, k3, preferred_element_type=_F32)
            s = s + mask[:, lo:lo + kv_block][None]
            m_new = jnp.maximum(m, jnp.max(s, axis=-1, keepdims=True))
            alpha = jnp.exp(m - m_new)
            pblk = jnp.exp(s - m_new)
            l = alpha * l + jnp.sum(pblk, axis=-1, keepdims=True)
            acc = alpha * acc + jnp.einsum('nqk,nkd->nqd', pblk.astype(_BF16), v3,
                                           preferred_element_type=_F32)
            m = m_new

        ctx = acc * pl.reciprocal(l, approx=True)            # EUP, not VALU divide
        ctx = jnp.transpose(ctx, (1, 0, 2)).reshape(TQ, H)

        attn_out = jnp.dot(ctx.astype(_BF16), wo_ref[...],
                           preferred_element_type=_F32) + bo_ref[...].astype(_F32)

        g1, be1 = g1_ref[...].astype(_F32), be1_ref[...].astype(_F32)
        g2, be2 = g2_ref[...].astype(_F32), be2_ref[...].astype(_F32)

        if pre_layer_norm:
            h1 = xq + attn_out
            ffn_in = _layer_norm_f32(h1, g2, be2)
        else:
            h1 = _layer_norm_f32(xq + attn_out, g1, be1)
            ffn_in = h1

        inter = jnp.dot(ffn_in.astype(_BF16), wi_ref[...],
                        preferred_element_type=_F32) + bi_ref[...].astype(_F32)
        # DeepSpeed/BERT gelu (tanh approximation), f32.
        inter = 0.5 * inter * (1.0 + jnp.tanh(
            _GELU_C * (inter + 0.044715 * inter * inter * inter)))
        ffn_out = jnp.dot(inter.astype(_BF16), w2_ref[...],
                          preferred_element_type=_F32) + b2_ref[...].astype(_F32)

        if pre_layer_norm:
            out = h1 + ffn_out
        else:
            out = _layer_norm_f32(h1 + ffn_out, g2, be2)

        out_ref[...] = out.astype(out_ref.dtype)
    return kernel


def attention_ffn(x, q, k, v, mask3, p, num_heads, pre_layer_norm):
    B, S, H = x.shape
    I = p["wi"].shape[1]
    TQ = _pick_seq_tile(S)
    TK = _pick_kv_tile(S)

    def const(shape):
        return pl.BlockSpec(shape, lambda b, qi: (0, 0))

    cost = pl.CostEstimate(
        flops=B * (4 * S * S * H + 2 * S * H * H + 4 * S * H * I),
        transcendentals=B * (num_heads * S * S + S * I),
        bytes_accessed=(2 * (H * H + 2 * H * I) + 4 * (6 * H + I)
                        + 5 * 2 * B * S * H + 4 * B * S))

    return pl.pallas_call(
        make_attn_ffn_kernel(num_heads, pre_layer_norm, TK),
        out_shape=jax.ShapeDtypeStruct((B, S, H), _BF16),
        grid=(B, S // TQ),
        in_specs=[
            pl.BlockSpec((None, TQ, H), lambda b, qi: (b, qi, 0)),   # x residual tile
            pl.BlockSpec((None, TQ, H), lambda b, qi: (b, qi, 0)),   # q tile
            pl.BlockSpec((None, S, H), lambda b, qi: (b, 0, 0)),     # k (full S, once)
            pl.BlockSpec((None, S, H), lambda b, qi: (b, 0, 0)),     # v (full S, once)
            pl.BlockSpec((None, 1, S), lambda b, qi: (b, 0, 0)),     # additive key mask
            const((H, H)), const((1, H)),                            # wo, bo
            const((1, H)), const((1, H)),                            # gamma1, beta1
            const((H, I)), const((1, I)),                            # wi, bi
            const((I, H)), const((1, H)),                            # w2, b2
            const((1, H)), const((1, H)),                            # gamma2, beta2
        ],
        out_specs=pl.BlockSpec((None, TQ, H), lambda b, qi: (b, qi, 0)),
        compiler_params=pltpu.CompilerParams(
            dimension_semantics=("parallel", "parallel"),
            vmem_limit_bytes=_vmem_limit_bytes()),
        cost_estimate=cost,
    )(x, q, k, v, mask3,
      p["wo"], p["bo"], p["g1"], p["be1"],
      p["wi"], p["bi"], p["w2"], p["b2"], p["g2"], p["be2"])


def transformer_layer(x, mask3, p, num_heads, pre_layer_norm):
    q, k, v = qkv_projection(x, p, pre_layer_norm)
    return attention_ffn(x, q, k, v, mask3, p, num_heads, pre_layer_norm)


# ----------------------------------------------------------------------------
# Final LayerNorm kernel
# ----------------------------------------------------------------------------
def final_layer_norm_kernel(x_ref, g_ref, b_ref, out_ref):
    x = x_ref[...].astype(_F32)
    out_ref[...] = _layer_norm_f32(
        x, g_ref[...].astype(_F32), b_ref[...].astype(_F32)).astype(out_ref.dtype)


def final_layer_norm(x, gamma, beta):
    B, S, H = x.shape
    TS = _pick_seq_tile(S)
    return pl.pallas_call(
        final_layer_norm_kernel,
        out_shape=jax.ShapeDtypeStruct((B, S, H), x.dtype),
        grid=(B, S // TS),
        in_specs=[
            pl.BlockSpec((None, TS, H), lambda b, si: (b, si, 0)),
            pl.BlockSpec((1, H), lambda b, si: (0, 0)),
            pl.BlockSpec((1, H), lambda b, si: (0, 0)),
        ],
        out_specs=pl.BlockSpec((None, TS, H), lambda b, si: (b, si, 0)),
        compiler_params=pltpu.CompilerParams(
            dimension_semantics=("parallel", "parallel")),
    )(x, gamma, beta)


# ----------------------------------------------------------------------------
# DSEncoder forward
# ----------------------------------------------------------------------------
def ds_encoder_forward(hidden_states, attention_mask, params, *,
                       num_heads, pre_layer_norm, output_all_encoded_layers=True):
    """Mirrors DSEncoder.forward (checkpoint_activations=False path).

    attention_mask: (B, S) additive mask (0 keep / -10000 masked).
    Returns a list of encoded layers, matching the PyTorch module.
    """
    B, S = attention_mask.shape
    mask3 = attention_mask.reshape(B, 1, S).astype(_F32)
    # Residual stream carried in bf16 between layers (halves activation HBM traffic);
    # all in-kernel math stays f32.
    hidden_states = hidden_states.astype(_BF16)
    all_encoder_layers = []
    for layer_params in params["layers"]:
        hidden_states = transformer_layer(hidden_states, mask3, layer_params,
                                          num_heads, pre_layer_norm)
        if output_all_encoded_layers:
            all_encoder_layers.append(hidden_states)
    if not output_all_encoded_layers:
        if pre_layer_norm:
            hidden_states = final_layer_norm(hidden_states,
                                             params["final_gamma"],
                                             params["final_beta"])
        all_encoder_layers.append(hidden_states)
    # TODO(synk): hidden_states.register_hook(...) / self.grads capture backward-pass
    # gradients; there is no forward-only Pallas equivalent.
    return all_encoder_layers


# ----------------------------------------------------------------------------
# Deterministic parameter init + demo run
# ----------------------------------------------------------------------------
def init_params(key, num_layers, H, I, num_heads):
    hd = H // num_heads
    scale = 1.0 / float(hd) ** 0.5
    layers = []
    for _ in range(num_layers):
        keys = jax.random.split(key, 7)
        key = keys[0]

        def rnd(k, shape):
            return 0.02 * jax.random.normal(k, shape, dtype=_F32)

        wq, wk, wv = rnd(keys[1], (H, H)), rnd(keys[2], (H, H)), rnd(keys[3], (H, H))
        bq = bk = bv = jnp.zeros((1, H), _F32)
        p = {
            # Q/K/V fused into one (H, 3H) matmul; 1/sqrt(hd) folded into Q cols/bias.
            "wqkv": jnp.concatenate([wq * scale, wk, wv], axis=1).astype(_BF16),
            "bqkv": jnp.concatenate([bq * scale, bk, bv], axis=1),
            "wo": rnd(keys[4], (H, H)).astype(_BF16), "bo": jnp.zeros((1, H), _F32),
            "wi": rnd(keys[5], (H, I)).astype(_BF16), "bi": jnp.zeros((1, I), _F32),
            "w2": rnd(keys[6], (I, H)).astype(_BF16), "b2": jnp.zeros((1, H), _F32),
            "g1": jnp.ones((1, H), _F32), "be1": jnp.zeros((1, H), _F32),
            "g2": jnp.ones((1, H), _F32), "be2": jnp.zeros((1, H), _F32),
        }
        layers.append(p)
    return {"layers": layers,
            "final_gamma": jnp.ones((1, H), _F32),
            "final_beta": jnp.zeros((1, H), _F32)}


if __name__ == "__main__":
    B, S, H, NH, NL = 2, 8, 128, 4, 2
    I = 4 * H

    key = jax.random.PRNGKey(0)
    key, k_x = jax.random.split(key)
    hidden_states = jax.random.normal(k_x, (B, S, H), dtype=jnp.float32)

    # BERT-style additive mask: keep everything except last 2 tokens of batch 1.
    input_mask = jnp.ones((B, S), dtype=jnp.float32)
    input_mask = input_mask.at[1, -2:].set(0.0)
    attention_mask = (1.0 - input_mask) * -10000.0

    params = init_params(key, NL, H, I, NH)

    # Config 1: post-layer-norm, output_all_encoded_layers=True (default path).
    outs_post = ds_encoder_forward(hidden_states, attention_mask, params,
                                   num_heads=NH, pre_layer_norm=False,
                                   output_all_encoded_layers=True)
    # Config 2: pre-layer-norm, last layer only -> exercises FinalLayerNorm kernel.
    outs_pre = ds_encoder_forward(hidden_states, attention_mask, params,
                                  num_heads=NH, pre_layer_norm=True,
                                  output_all_encoded_layers=False)

    for o in outs_post + outs_pre:
        jax.block_until_ready(o)
        assert o.shape == (B, S, H)
        assert bool(jnp.all(jnp.isfinite(o.astype(jnp.float32))))

    print("KERNEL_OK")
</pallas_src>

<mosaic_0001>
module attributes {stable_mosaic.version = 11 : i64} {
  func.func @kernel(%arg0: i32, %arg1: i32, %arg2: memref<1x8x128xbf16, #tpu.memory_space<vmem>>, %arg3: memref<1x128xf32, #tpu.memory_space<vmem>>, %arg4: memref<1x128xf32, #tpu.memory_space<vmem>>, %arg5: memref<128x384xbf16, #tpu.memory_space<vmem>>, %arg6: memref<1x384xf32, #tpu.memory_space<vmem>>, %arg7: memref<1x8x128xbf16, #tpu.memory_space<vmem>>, %arg8: memref<1x8x128xbf16, #tpu.memory_space<vmem>>, %arg9: memref<1x8x128xbf16, #tpu.memory_space<vmem>>) attributes {dimension_semantics = [#tpu.dimension_semantics<parallel>, #tpu.dimension_semantics<parallel>], iteration_bounds = array<i64: 2, 1>, scalar_prefetch = 0 : i64, scratch_operands = 0 : i64, tpu.core_type = #tpu.core_type<tc>, window_params = [{transform_indices = @transform_0, window_bounds = array<i64: 1, 8, 128>}, {pipeline_mode = #tpu.pipeline_mode<synchronous>, transform_indices = @transform_1, window_bounds = array<i64: 1, 128>}, {pipeline_mode = #tpu.pipeline_mode<synchronous>, transform_indices = @transform_2, window_bounds = array<i64: 1, 128>}, {pipeline_mode = #tpu.pipeline_mode<synchronous>, transform_indices = @transform_3, window_bounds = array<i64: 128, 384>}, {pipeline_mode = #tpu.pipeline_mode<synchronous>, transform_indices = @transform_4, window_bounds = array<i64: 1, 384>}, {transform_indices = @transform_5, window_bounds = array<i64: 1, 8, 128>}, {transform_indices = @transform_6, window_bounds = array<i64: 1, 8, 128>}, {transform_indices = @transform_7, window_bounds = array<i64: 1, 8, 128>}]} {
    %c0 = arith.constant 0 : index
    %c0_0 = arith.constant 0 : index
    %c0_1 = arith.constant 0 : index
    %0 = vector.load %arg2[%c0, %c0_0, %c0_1] : memref<1x8x128xbf16, #tpu.memory_space<vmem>>, vector<1x8x128xbf16>
    %1 = vector.shape_cast %0 : vector<1x8x128xbf16> to vector<8x128xbf16>
    %2 = arith.extf %1 : vector<8x128xbf16> to vector<8x128xf32>
    %3 = arith.truncf %2 : vector<8x128xf32> to vector<8x128xbf16>
    %c0_2 = arith.constant 0 : index
    %c0_3 = arith.constant 0 : index
    %4 = vector.load %arg5[%c0_2, %c0_3] : memref<128x384xbf16, #tpu.memory_space<vmem>>, vector<128x384xbf16>
    %cst = arith.constant dense<0.000000e+00> : vector<8x384xf32>
    %5 = tpu.matmul %3, %4, %cst {dimension_numbers = #tpu.dot_dimension_numbers<[1], [0], [0], [1], [0, 0, 1, 1], [], []>} : vector<8x128xbf16>, vector<128x384xbf16>, vector<8x384xf32> -> vector<8x384xf32>
    %c0_4 = arith.constant 0 : index
    %c0_5 = arith.constant 0 : index
    %6 = vector.load %arg6[%c0_4, %c0_5] : memref<1x384xf32, #tpu.memory_space<vmem>>, vector<1x384xf32>
    %7 = vector.broadcast %6 : vector<1x384xf32> to vector<8x384xf32>
    %8 = arith.addf %5, %7 : vector<8x384xf32>
    %9 = vector.extract_strided_slice %8 {offsets = [0, 0], sizes = [8, 128], strides = [1, 1]} : vector<8x384xf32> to vector<8x128xf32>
    %10 = arith.truncf %9 : vector<8x128xf32> to vector<8x128xbf16>
    %c0_6 = arith.constant 0 : index
    %c0_7 = arith.constant 0 : index
    %c0_8 = arith.constant 0 : index
    %11 = vector.load %arg7[%c0_6, %c0_7, %c0_8] : memref<1x8x128xbf16, #tpu.memory_space<vmem>>, vector<1x8x128xbf16>
    %12 = vector.shape_cast %11 : vector<1x8x128xbf16> to vector<8x128xbf16>
    %13 = vector.shape_cast %10 : vector<8x128xbf16> to vector<1x8x128xbf16>
    tpu.vector_store %arg7[%c0_6, %c0_7, %c0_8], %13 {strides = array<i32>} : memref<1x8x128xbf16, #tpu.memory_space<vmem>>, vector<1x8x128xbf16>,
    %14 = vector.extract_strided_slice %8 {offsets = [0, 128], sizes = [8, 128], strides = [1, 1]} : vector<8x384xf32> to vector<8x128xf32>
    %15 = arith.truncf %14 : vector<8x128xf32> to vector<8x128xbf16>
    %c0_9 = arith.constant 0 : index
    %c0_10 = arith.constant 0 : index
    %c0_11 = arith.constant 0 : index
    %16 = vector.load %arg8[%c0_9, %c0_10, %c0_11] : memref<1x8x128xbf16, #tpu.memory_space<vmem>>, vector<1x8x128xbf16>
    %17 = vector.shape_cast %16 : vector<1x8x128xbf16> to vector<8x128xbf16>
    %18 = vector.shape_cast %15 : vector<8x128xbf16> to vector<1x8x128xbf16>
    tpu.vector_store %arg8[%c0_9, %c0_10, %c0_11], %18 {strides = array<i32>} : memref<1x8x128xbf16, #tpu.memory_space<vmem>>, vector<1x8x128xbf16>,
    %19 = vector.extract_strided_slice %8 {offsets = [0, 256], sizes = [8, 128], strides = [1, 1]} : vector<8x384xf32> to vector<8x128xf32>
    %20 = arith.truncf %19 : vector<8x128xf32> to vector<8x128xbf16>
    %c0_12 = arith.constant 0 : index
    %c0_13 = arith.constant 0 : index
    %c0_14 = arith.constant 0 : index
    %21 = vector.load %arg9[%c0_12, %c0_13, %c0_14] : memref<1x8x128xbf16, #tpu.memory_space<vmem>>, vector<1x8x128xbf16>
    %22 = vector.shape_cast %21 : vector<1x8x128xbf16> to vector<8x128xbf16>
    %23 = vector.shape_cast %20 : vector<8x128xbf16> to vector<1x8x128xbf16>
    tpu.vector_store %arg9[%c0_12, %c0_13, %c0_14], %23 {strides = array<i32>} : memref<1x8x128xbf16, #tpu.memory_space<vmem>>, vector<1x8x128xbf16>,
    return
  }
  func.func @transform_0(%arg0: i32, %arg1: i32) -> (i32, i32, i32) {
    %c0_i32 = arith.constant 0 : i32
    %c0_i32_0 = arith.constant 0 : i32
    return %arg0, %arg1, %c0_i32 : i32, i32, i32
  }
  func.func @transform_1(%arg0: i32, %arg1: i32) -> (i32, i32) {
    %c0_i32 = arith.constant 0 : i32
    %c0_i32_0 = arith.constant 0 : i32
    %c0_i32_1 = arith.constant 0 : i32
    return %c0_i32, %c0_i32_0 : i32, i32
  }
  func.func @transform_2(%arg0: i32, %arg1: i32) -> (i32, i32) {
    %c0_i32 = arith.constant 0 : i32
    %c0_i32_0 = arith.constant 0 : i32
    %c0_i32_1 = arith.constant 0 : i32
    return %c0_i32, %c0_i32_0 : i32, i32
  }
  func.func @transform_3(%arg0: i32, %arg1: i32) -> (i32, i32) {
    %c0_i32 = arith.constant 0 : i32
    %c0_i32_0 = arith.constant 0 : i32
    %c0_i32_1 = arith.constant 0 : i32
    return %c0_i32, %c0_i32_0 : i32, i32
  }
  func.func @transform_4(%arg0: i32, %arg1: i32) -> (i32, i32) {
    %c0_i32 = arith.constant 0 : i32
    %c0_i32_0 = arith.constant 0 : i32
    %c0_i32_1 = arith.constant 0 : i32
    return %c0_i32, %c0_i32_0 : i32, i32
  }
  func.func @transform_5(%arg0: i32, %arg1: i32) -> (i32, i32, i32) {
    %c0_i32 = arith.constant 0 : i32
    %c0_i32_0 = arith.constant 0 : i32
    return %arg0, %arg1, %c0_i32 : i32, i32, i32
  }
  func.func @transform_6(%arg0: i32, %arg1: i32) -> (i32, i32, i32) {
    %c0_i32 = arith.constant 0 : i32
    %c0_i32_0 = arith.constant 0 : i32
    return %arg0, %arg1, %c0_i32 : i32, i32, i32
  }
  func.func @transform_7(%arg0: i32, %arg1: i32) -> (i32, i32, i32) {
    %c0_i32 = arith.constant 0 : i32
    %c0_i32_0 = arith.constant 0 : i32
    return %arg0, %arg1, %c0_i32 : i32, i32, i32
  }
}

</mosaic_0001>

<llo_original>
// kernel: tpu_custom_call.1
$region0: #{tpu_custom_call.1}
  #allocation0 [shape = 'u32[]', space=smem, size = 0x4, offset = 0x4, fixed_abs, tag = 'smem constant byte address 0x4 - core index']
  #allocation1 [shape = 'u32[144,128]{1,0:T(1,128)}', space=vmem, size = 0x12000, scoped, tag = 'internal scratch']
  %s0 = inlined_call_operand.hbm [shape: bf16[2,8,128], index: 0, kind: input, shape index: {}]
  %s1 = inlined_call_operand.vmem [shape: f32[1,128], index: 1, kind: input, shape index: {}]
  %s2 = inlined_call_operand.vmem [shape: f32[1,128], index: 2, kind: input, shape index: {}]
  %s3 = inlined_call_operand.hbm [shape: bf16[128,384], index: 3, kind: input, shape index: {}]
  %s4 = inlined_call_operand.vmem [shape: f32[1,384], index: 4, kind: input, shape index: {}]
  %s5 = inlined_call_operand.hbm [shape: bf16[2,8,128], index: 5, kind: output, shape index: {0}]
  %s6 = inlined_call_operand.hbm [shape: bf16[2,8,128], index: 6, kind: output, shape index: {1}]
  %s7 = inlined_call_operand.hbm [shape: bf16[2,8,128], index: 7, kind: output, shape index: {2}]
  %8 = xla_tuple %s5, %s6, %s7
  %s9 = sld [smem:[#allocation0]]
  $region77: #{tpu_custom_call.1} parent=0
    _
  %s11 = ssub.s32 1, %s9
  %s12 = scalar_select 0, %s11, %s9
  $region1: #{tpu_custom_call.1} parent=0
    #allocation2 [shape = 'u8[4096]{0}', space=vmem, size = 0x1000, scoped, tag = 'input window, operand 0']
    #allocation3 [shape = 's32[2]{0}', space=sflag, size = 0x8, scoped, tag = 'scoped memory for tpu_custom_call.1']
    #allocation4 [shape = 's32[2]{0}', space=sflag, size = 0x8, scoped, tag = 'scoped memory for tpu_custom_call.1']
    #allocation5 [shape = 'u8[98304]{0}', space=vmem, size = 0x18000, scoped, tag = 'input window, operand 3, single buffered']
    #allocation6 [shape = 's32[1]{0}', space=sflag, size = 0x4, scoped, tag = 'scoped memory for tpu_custom_call.1']
    #allocation7 [shape = 'u8[4096]{0}', space=vmem, size = 0x1000, scoped, tag = 'output window, operand 0']
    #allocation8 [shape = 'u8[4096]{0}', space=vmem, size = 0x1000, scoped, tag = 'output window, operand 1']
    #allocation9 [shape = 's32[2]{0}', space=sflag, size = 0x8, scoped, tag = 'scoped memory for tpu_custom_call.1']
    #allocation10 [shape = 'u8[4096]{0}', space=vmem, size = 0x1000, scoped, tag = 'output window, operand 2']
    %13 = vsyncpa [#allocation3], 0
    %s14 = scalar_lea.sflag [#allocation3], 1
    %15 = vsyncpa %s14, 0
    %16 = vsyncpa [#allocation6], 0
    %17 = vsyncpa [#allocation4], 0
    %s18 = scalar_lea.sflag [#allocation4], 1
    %19 = vsyncpa %s18, 0
    %20 = vsyncpa [#allocation9], 0
    %s21 = scalar_lea.sflag [#allocation9], 1
    %22 = vsyncpa %s21, 0
    loop: start=0, step=1, limit=4
    $region2: #{tpu_custom_call.1} parent=1 // loop_pre_header
      _
    $region3: #{tpu_custom_call.1} parent=1 // loop_header
      %s24 = sphi 0, %s28
      %p25 = scmp.ge.s32.totalorder %s24, 4
      %s31 = sphi 0, %s43
      %s32 = sphi 0, %s39
      %s33 = sphi 0, %s31
      %s34 = sphi 0, %s32
      %s35 = sphi 0, %s33
      %s36 = sphi 0, %s34
      %s48 = sphi 0, %s50
      %s51 = sphi 0, %s48
      %s52 = sphi 0, %s51
      %s68 = sphi 0, %s52
      %s72 = sphi 0, %s72
      %s74 = sphi 0, %s72
      %s75 = sphi 0, %s74
      %s89 = sphi 0, %s75
      %s93 = sphi 0, %s93
      %s95 = sphi 0, %s93
      %s96 = sphi 0, %s95
      %s110 = sphi 0, %s96
      %s114 = sphi 0, %s114
      %s116 = sphi 0, %s114
      %s117 = sphi 0, %s116
      %s131 = sphi 0, %s117
      %s135 = sphi 0, %s135
      %s137 = sphi 0, %s135
      %s138 = sphi 0, %s137
      %s152 = sphi 0, %s138
      %s160 = sphi 0, %s162
      %s163 = sphi 0, %s160
      %s164 = sphi 0, %s163
      %s180 = sphi 0, %s164
      %s188 = sphi 0, %s190
      %s191 = sphi 0, %s188
      %s192 = sphi 0, %s191
      %s208 = sphi 0, %s192
      %s216 = sphi 0, %s218
      %s219 = sphi 0, %s216
      %s220 = sphi 0, %s219
      %s236 = sphi 0, %s220
    $region4: #{tpu_custom_call.1} parent=1 // loop_header_branch
      %27 = sbr.rel (%p25) target = $region8
    $region5: #{tpu_custom_call.1} parent=1 // loop_body
      %s29 = ssub.s32 %s24, 1
      %s30 = ssub.s32 %s24, 2
      %s37 = sadd.s32 1, %s32
      %p38 = scmp.ge.s32.totalorder %s37, 1
      %s39 = scalar_select %p38, 0, %s37
      %s40 = sadd.s32 1, %s31
      %s41 = scalar_select %p38, %s40, %s31
      %p42 = scmp.ge.s32.totalorder %s41, 2
      %s43 = scalar_select %p42, 0, %s41
      %s44 = ssub.s32 %s31, %s43
      %s45 = ssub.s32 %s32, %s39
      %s46 = sor.u32 %s44, %s45
      %p47 = scmp.eq.s32.totalorder %s46, 0
      %s49 = sadd.s32 %s48, 1
      %s50 = scalar_select %p47, %s48, %s49
      %p53 = pneg %p47
      %p54 = scmp.eq.s32.totalorder %s24, 1
      %p55 = por %p53, %p54
      %p56 = scmp.ne.s32.totalorder %s48, %s51
      %p57 = scmp.eq.s32.totalorder %s24, 0
      %p58 = por %p56, %p57
      %p59 = scmp.ne.s32.totalorder %s48, %s51
      %p60 = scmp.eq.s32.totalorder %s29, 1
      %p61 = por %p59, %p60
      %p62 = scmp.ne.s32.totalorder %s51, %s52
      %p63 = scmp.eq.s32.totalorder %s29, 0
      %p64 = por %p62, %p63
      %p65 = scmp.ne.s32.totalorder %s51, %s52
      %p66 = scmp.eq.s32.totalorder %s30, 1
      %p67 = por %p65, %p66
      %p69 = scmp.ne.s32.totalorder %s52, %s68
      %p70 = scmp.eq.s32.totalorder %s30, 0
      %p71 = por %p69, %p70
      %s73 = sadd.s32 %s72, 1
      %p76 = scmp.eq.s32.totalorder %s24, 1
      %p77 = scmp.ne.s32.totalorder %s72, %s74
      %p78 = scmp.eq.s32.totalorder %s24, 0
      %p79 = por %p77, %p78
      %p80 = scmp.ne.s32.totalorder %s72, %s74
      %p81 = scmp.eq.s32.totalorder %s29, 1
      %p82 = por %p80, %p81
      %p83 = scmp.ne.s32.totalorder %s74, %s75
      %p84 = scmp.eq.s32.totalorder %s29, 0
      %p85 = por %p83, %p84
      %p86 = scmp.ne.s32.totalorder %s74, %s75
      %p87 = scmp.eq.s32.totalorder %s30, 1
      %p88 = por %p86, %p87
      %p90 = scmp.ne.s32.totalorder %s75, %s89
      %p91 = scmp.eq.s32.totalorder %s30, 0
      %p92 = por %p90, %p91
      %s94 = sadd.s32 %s93, 1
      %p97 = scmp.eq.s32.totalorder %s24, 1
      %p98 = scmp.ne.s32.totalorder %s93, %s95
      %p99 = scmp.eq.s32.totalorder %s24, 0
      %p100 = por %p98, %p99
      %p101 = scmp.ne.s32.totalorder %s93, %s95
      %p102 = scmp.eq.s32.totalorder %s29, 1
      %p103 = por %p101, %p102
      %p104 = scmp.ne.s32.totalorder %s95, %s96
      %p105 = scmp.eq.s32.totalorder %s29, 0
      %p106 = por %p104, %p105
      %p107 = scmp.ne.s32.totalorder %s95, %s96
      %p108 = scmp.eq.s32.totalorder %s30, 1
      %p109 = por %p107, %p108
      %p111 = scmp.ne.s32.totalorder %s96, %s110
      %p112 = scmp.eq.s32.totalorder %s30, 0
      %p113 = por %p111, %p112
      %s115 = sadd.s32 %s114, 1
      %p118 = scmp.eq.s32.totalorder %s24, 1
      %p119 = scmp.ne.s32.totalorder %s114, %s116
      %p120 = scmp.eq.s32.totalorder %s24, 0
      %p121 = por %p119, %p120
      %p122 = scmp.ne.s32.totalorder %s114, %s116
      %p123 = scmp.eq.s32.totalorder %s29, 1
      %p124 = por %p122, %p123
      %p125 = scmp.ne.s32.totalorder %s116, %s117
      %p126 = scmp.eq.s32.totalorder %s29, 0
      %p127 = por %p125, %p126
      %p128 = scmp.ne.s32.totalorder %s116, %s117
      %p129 = scmp.eq.s32.totalorder %s30, 1
      %p130 = por %p128, %p129
      %p132 = scmp.ne.s32.totalorder %s117, %s131
      %p133 = scmp.eq.s32.totalorder %s30, 0
      %p134 = por %p132, %p133
      %s136 = sadd.s32 %s135, 1
      %p139 = scmp.eq.s32.totalorder %s24, 1
      %p140 = scmp.ne.s32.totalorder %s135, %s137
      %p141 = scmp.eq.s32.totalorder %s24, 0
      %p142 = por %p140, %p141
      %p143 = scmp.ne.s32.totalorder %s135, %s137
      %p144 = scmp.eq.s32.totalorder %s29, 1
      %p145 = por %p143, %p144
      %p146 = scmp.ne.s32.totalorder %s137, %s138
      %p147 = scmp.eq.s32.totalorder %s29, 0
      %p148 = por %p146, %p147
      %p149 = scmp.ne.s32.totalorder %s137, %s138
      %p150 = scmp.eq.s32.totalorder %s30, 1
      %p151 = por %p149, %p150
      %p153 = scmp.ne.s32.totalorder %s138, %s152
      %p154 = scmp.eq.s32.totalorder %s30, 0
      %p155 = por %p153, %p154
      %s156 = ssub.s32 %s31, %s43
      %s157 = ssub.s32 %s32, %s39
      %s158 = sor.u32 %s156, %s157
      %p159 = scmp.eq.s32.totalorder %s158, 0
      %s161 = sadd.s32 %s160, 1
      %s162 = scalar_select %p159, %s160, %s161
      %p165 = pneg %p159
      %p166 = scmp.eq.s32.totalorder %s24, 1
      %p167 = por %p165, %p166
      %p168 = scmp.ne.s32.totalorder %s160, %s163
      %p169 = scmp.eq.s32.totalorder %s24, 0
      %p170 = por %p168, %p169
      %p171 = scmp.ne.s32.totalorder %s160, %s163
      %p172 = scmp.eq.s32.totalorder %s29, 1
      %p173 = por %p171, %p172
      %p174 = scmp.ne.s32.totalorder %s163, %s164
      %p175 = scmp.eq.s32.totalorder %s29, 0
      %p176 = por %p174, %p175
      %p177 = scmp.ne.s32.totalorder %s163, %s164
      %p178 = scmp.eq.s32.totalorder %s30, 1
      %p179 = por %p177, %p178
      %p181 = scmp.ne.s32.totalorder %s164, %s180
      %p182 = scmp.eq.s32.totalorder %s30, 0
      %p183 = por %p181, %p182
      %s184 = ssub.s32 %s31, %s43
      %s185 = ssub.s32 %s32, %s39
      %s186 = sor.u32 %s184, %s185
      %p187 = scmp.eq.s32.totalorder %s186, 0
      %s189 = sadd.s32 %s188, 1
      %s190 = scalar_select %p187, %s188, %s189
      %p193 = pneg %p187
      %p194 = scmp.eq.s32.totalorder %s24, 1
      %p195 = por %p193, %p194
      %p196 = scmp.ne.s32.totalorder %s188, %s191
      %p197 = scmp.eq.s32.totalorder %s24, 0
      %p198 = por %p196, %p197
      %p199 = scmp.ne.s32.totalorder %s188, %s191
      %p200 = scmp.eq.s32.totalorder %s29, 1
      %p201 = por %p199, %p200
      %p202 = scmp.ne.s32.totalorder %s191, %s192
      %p203 = scmp.eq.s32.totalorder %s29, 0
      %p204 = por %p202, %p203
      %p205 = scmp.ne.s32.totalorder %s191, %s192
      %p206 = scmp.eq.s32.totalorder %s30, 1
      %p207 = por %p205, %p206
      %p209 = scmp.ne.s32.totalorder %s192, %s208
      %p210 = scmp.eq.s32.totalorder %s30, 0
      %p211 = por %p209, %p210
      %s212 = ssub.s32 %s31, %s43
      %s213 = ssub.s32 %s32, %s39
      %s214 = sor.u32 %s212, %s213
      %p215 = scmp.eq.s32.totalorder %s214, 0
      %s217 = sadd.s32 %s216, 1
      %s218 = scalar_select %p215, %s216, %s217
      %p221 = pneg %p215
      %p222 = scmp.eq.s32.totalorder %s24, 1
      %p223 = por %p221, %p222
      %p224 = scmp.ne.s32.totalorder %s216, %s219
      %p225 = scmp.eq.s32.totalorder %s24, 0
      %p226 = por %p224, %p225
      %p227 = scmp.ne.s32.totalorder %s216, %s219
      %p228 = scmp.eq.s32.totalorder %s29, 1
      %p229 = por %p227, %p228
      %p230 = scmp.ne.s32.totalorder %s219, %s220
      %p231 = scmp.eq.s32.totalorder %s29, 0
      %p232 = por %p230, %p231
      %p233 = scmp.ne.s32.totalorder %s219, %s220
      %p234 = scmp.eq.s32.totalorder %s30, 1
      %p235 = por %p233, %p234
      %p237 = scmp.ne.s32.totalorder %s220, %s236
      %p238 = scmp.eq.s32.totalorder %s30, 0
      %p239 = por %p237, %p238
      %p240 = scmp.le.s32.totalorder 1, %s24
      %p241 = scmp.lt.s32.totalorder %s24, 3
      %p242 = pnand %p240, %p241
      %p243 = pneg %p242
      // Predicated region
      $region9: #{tpu_custom_call.1} parent=5 // pred_check
        _
      $region10: #{tpu_custom_call.1} parent=5 // pred_check_branch
        %245 = sbr.rel (%p242) target = $region12
      $region11: #{tpu_custom_call.1} parent=5 // pred_region
        %s246 = ssub.s32 %s24, 1
        // Predicated region
        $region13: #{tpu_custom_call.1} parent=11 // pred_check
          %p247 = pneg %p85
        $region14: #{tpu_custom_call.1} parent=11 // pred_check_branch
          %249 = sbr.rel (%p247) target = $region16
        $region15: #{tpu_custom_call.1} parent=11 // pred_region
          _
        $region16: #{tpu_custom_call.1} parent=11 // pred_fallthru
          _
        // Predicated region
        $region17: #{tpu_custom_call.1} parent=11 // pred_check
          %p250 = pneg %p106
        $region18: #{tpu_custom_call.1} parent=11 // pred_check_branch
          %252 = sbr.rel (%p250) target = $region20
        $region19: #{tpu_custom_call.1} parent=11 // pred_region
          _
        $region20: #{tpu_custom_call.1} parent=11 // pred_fallthru
          _
        // Predicated region
        $region21: #{tpu_custom_call.1} parent=11 // pred_check
          %p253 = pneg %p127
        $region22: #{tpu_custom_call.1} parent=11 // pred_check_branch
          %255 = sbr.rel (%p253) target = $region24
        $region23: #{tpu_custom_call.1} parent=11 // pred_region
          %s257 = ssub.s32 3072, 3072
          %258 = vsyncadd [#allocation6], %s257
          %s259 = sshll.u32 [#allocation5], 4
          %s260 = int_to_ptr.vmem [resolvable:$true] %s259
          %265 = dma.hbm_to_vmem [thread:$0]  %s3, 3072, %s260, [#allocation6], 192, 192, 12
        $region24: #{tpu_custom_call.1} parent=11 // pred_fallthru
          _
        // Predicated region
        $region25: #{tpu_custom_call.1} parent=11 // pred_check
          %p266 = pneg %p148
        $region26: #{tpu_custom_call.1} parent=11 // pred_check_branch
          %268 = sbr.rel (%p266) target = $region28
        $region27: #{tpu_custom_call.1} parent=11 // pred_region
          _
        $region28: #{tpu_custom_call.1} parent=11 // pred_fallthru
          _
      $region12: #{tpu_custom_call.1} parent=5 // pred_fallthru
        _
      %p269 = scmp.lt.s32.totalorder %s24, 2
      // Predicated region
      $region29: #{tpu_custom_call.1} parent=5 // pred_check
        %p270 = pneg %p269
      $region30: #{tpu_custom_call.1} parent=5 // pred_check_branch
        %272 = sbr.rel (%p270) target = $region32
      $region31: #{tpu_custom_call.1} parent=5 // pred_region
        // Predicated region
        $region33: #{tpu_custom_call.1} parent=31 // pred_check
          %p273 = pneg %p58
        $region34: #{tpu_custom_call.1} parent=31 // pred_check_branch
          %275 = sbr.rel (%p273) target = $region36
        $region35: #{tpu_custom_call.1} parent=31 // pred_region
          %s276 = sand.u32 %s48, 1
          %s277 = scalar_lea.sflag [#allocation3], %s276
          %s278 = sand.u32 %s48, 1
          %s279 = smul.addr %s278, 4
          %s280 = scalar_lea.vmem [#allocation2], %s279
          %s282 = ssub.s32 64, 64
          %283 = vsyncadd %s277, %s282
          %s284 = sadd.s32 %s32, %s31
          %s285 = smul.addr %s284, 64
          %s286 = scalar_lea.hbm %s0, %s285
          %s288 = sshll.u32 %s280, 4
          %s289 = int_to_ptr.vmem [resolvable:$true] %s288
          %291 = dma.hbm_to_vmem [thread:$0]  %s286, 64, %s289, %s277
        $region36: #{tpu_custom_call.1} parent=31 // pred_fallthru
          _
      $region32: #{tpu_custom_call.1} parent=5 // pred_fallthru
        _
      %p292 = scmp.le.s32.totalorder 1, %s24
      %p293 = scmp.lt.s32.totalorder %s24, 3
      %p294 = pnand %p292, %p293
      %p295 = pneg %p294
      // Predicated region
      $region37: #{tpu_custom_call.1} parent=5 // pred_check
        _
      $region38: #{tpu_custom_call.1} parent=5 // pred_check_branch
        %297 = sbr.rel (%p294) target = $region40
      $region39: #{tpu_custom_call.1} parent=5 // pred_region
        %s298 = ssub.s32 %s24, 1
        %s299 = sand.u32 %s51, 1
        %s300 = scalar_lea.sflag [#allocation3], %s299
        %s301 = sand.u32 %s51, 1
        %s302 = smul.addr %s301, 4
        %s303 = scalar_lea.vmem [#allocation2], %s302
        // Predicated region
        $region41: #{tpu_custom_call.1} parent=39 // pred_check
          %p304 = pneg %p64
        $region42: #{tpu_custom_call.1} parent=39 // pred_check_branch
          %306 = sbr.rel (%p304) target = $region44
        $region43: #{tpu_custom_call.1} parent=39 // pred_region
          %307 = dma.done %s300, 64
        $region44: #{tpu_custom_call.1} parent=39 // pred_fallthru
          _
        // Predicated region
        $region45: #{tpu_custom_call.1} parent=39 // pred_check
          %p308 = pneg %p127
        $region46: #{tpu_custom_call.1} parent=39 // pred_check_branch
          %310 = sbr.rel (%p308) target = $region48
        $region47: #{tpu_custom_call.1} parent=39 // pred_region
          %311 = dma.done [#allocation6], 3072
        $region48: #{tpu_custom_call.1} parent=39 // pred_fallthru
          _
        %s312 = sand.u32 %s51, 1
        %s313 = scalar_lea.sflag [#allocation3], %s312
        %s314 = sand.u32 %s51, 1
        %s315 = smul.addr %s314, 4
        %s316 = scalar_lea.vmem [#allocation2], %s315
        %p317 = pneg %p64
        %p318 = pneg %p61
        %p319 = pneg %p85
        %p320 = pneg %p82
        %p321 = pneg %p106
        %p322 = pneg %p103
        %p323 = pneg %p127
        %p324 = pneg %p124
        %p325 = pneg %p148
        %p326 = pneg %p145
        %p327 = pneg %p176
        %p328 = pneg %p173
        %s329 = sand.u32 %s163, 1
        %s330 = scalar_lea.sflag [#allocation4], %s329
        %s331 = sand.u32 %s163, 1
        %s332 = smul.addr %s331, 4
        %s333 = scalar_lea.vmem [#allocation7], %s332
        %p334 = pneg %p204
        %p335 = pneg %p201
        %s336 = sand.u32 %s29, 1
        %s337 = scalar_lea.sflag [#allocation9], %s336
        %s338 = sand.u32 %s191, 1
        %s339 = smul.addr %s338, 4
        %s340 = scalar_lea.vmem [#allocation8], %s339
        %p341 = pneg %p232
        %p342 = pneg %p229
        %s343 = sand.u32 %s29, 1
        %s344 = scalar_lea.sflag [#allocation9], %s343
        %s345 = sand.u32 %s219, 1
        %s346 = smul.addr %s345, 4
        %s347 = scalar_lea.vmem [#allocation10], %s346
        %v349 = vld [vmem:[%s303] sm:$0xf]
        %v350 = vld [vmem:[#allocation5] sm:$0xff]
        %v351 = vld [vmem:[#allocation5 + $0x8] sm:$0xf]
        %v352 = vld [vmem:[#allocation5 + $0xc] sm:$0xff]
        %v353 = vld [vmem:[#allocation5 + $0x14] sm:$0xf]
        %v354 = vld [vmem:[#allocation5 + $0x18] sm:$0xff]
        %v355 = vld [vmem:[#allocation5 + $0x20] sm:$0xf]
        %v356 = vld [vmem:[#allocation5 + $0x24] sm:$0xff]
        %v357 = vld [vmem:[#allocation5 + $0x2c] sm:$0xf]
        %v358 = vld [vmem:[#allocation5 + $0x30] sm:$0xff]
        %v359 = vld [vmem:[#allocation5 + $0x38] sm:$0xf]
        %v360 = vld [vmem:[#allocation5 + $0x3c] sm:$0xff]
        %v361 = vld [vmem:[#allocation5 + $0x44] sm:$0xf]
        %v362 = vld [vmem:[#allocation5 + $0x48] sm:$0xff]
        %v363 = vld [vmem:[#allocation5 + $0x50] sm:$0xf]
        %v364 = vld [vmem:[#allocation5 + $0x54] sm:$0xff]
        %v365 = vld [vmem:[#allocation5 + $0x5c] sm:$0xf]
        %v366 = vld [vmem:[#allocation5 + $0x60] sm:$0xff]
        %v367 = vld [vmem:[#allocation5 + $0x68] sm:$0xf]
        %v368 = vld [vmem:[#allocation5 + $0x6c] sm:$0xff]
        %v369 = vld [vmem:[#allocation5 + $0x74] sm:$0xf]
        %v370 = vld [vmem:[#allocation5 + $0x78] sm:$0xff]
        %v371 = vld [vmem:[#allocation5 + $0x80] sm:$0xf]
        %v372 = vld [vmem:[#allocation5 + $0x84] sm:$0xff]
        %v373 = vld [vmem:[#allocation5 + $0x8c] sm:$0xf]
        %v374 = vld [vmem:[#allocation5 + $0x90] sm:$0xff]
        %v375 = vld [vmem:[#allocation5 + $0x98] sm:$0xf]
        %v376 = vld [vmem:[#allocation5 + $0x9c] sm:$0xff]
        %v377 = vld [vmem:[#allocation5 + $0xa4] sm:$0xf]
        %v378 = vld [vmem:[#allocation5 + $0xa8] sm:$0xff]
        %v379 = vld [vmem:[#allocation5 + $0xb0] sm:$0xf]
        %v380 = vld [vmem:[#allocation5 + $0xb4] sm:$0xff]
        %v381 = vld [vmem:[#allocation5 + $0xbc] sm:$0xf]
        %v382 = vld [vmem:[%s4] sm:$0x7]
        %v384 = vlaneseq
        %v385 = vshrl.u32 %v384, 7
        %v386 = vsub.s32 0, %v385
        %v387 = vrot.slane %v382, %v386
        %v388 = vlaneseq
        %v389 = vshrl.u32 %v388, 7
        %v390 = vsub.s32 1, %v389
        %v391 = vrot.slane %v382, %v390
        %v392 = vlaneseq
        %v393 = vshrl.u32 %v392, 7
        %v394 = vsub.s32 2, %v393
        %v395 = vrot.slane %v382, %v394
        %v431 = vunpack.c.l.b16 %v350
        %v432 = vunpack.c.h.b16 %v350
        %v433 = vunpack.c.l.b16 %v351
        %v434 = vunpack.c.l.b16 %v352
        %v435 = vunpack.c.h.b16 %v352
        %v436 = vunpack.c.l.b16 %v353
        %v437 = vunpack.c.l.b16 %v354
        %v438 = vunpack.c.h.b16 %v354
        %v439 = vunpack.c.l.b16 %v355
        %v440 = vunpack.c.l.b16 %v356
        %v441 = vunpack.c.h.b16 %v356
        %v442 = vunpack.c.l.b16 %v357
        %v443 = vunpack.c.l.b16 %v358
        %v444 = vunpack.c.h.b16 %v358
        %v445 = vunpack.c.l.b16 %v359
        %v446 = vunpack.c.l.b16 %v360
        %v447 = vunpack.c.h.b16 %v360
        %v448 = vunpack.c.l.b16 %v361
        %v449 = vunpack.c.l.b16 %v362
        %v450 = vunpack.c.h.b16 %v362
        %v451 = vunpack.c.l.b16 %v363
        %v452 = vunpack.c.l.b16 %v364
        %v453 = vunpack.c.h.b16 %v364
        %v454 = vunpack.c.l.b16 %v365
        %v455 = vunpack.c.l.b16 %v366
        %v456 = vunpack.c.h.b16 %v366
        %v457 = vunpack.c.l.b16 %v367
        %v458 = vunpack.c.l.b16 %v368
        %v459 = vunpack.c.h.b16 %v368
        %v460 = vunpack.c.l.b16 %v369
        %v461 = vunpack.c.l.b16 %v370
        %v462 = vunpack.c.h.b16 %v370
        %v463 = vunpack.c.l.b16 %v371
        %v464 = vunpack.c.l.b16 %v372
        %v465 = vunpack.c.h.b16 %v372
        %v466 = vunpack.c.l.b16 %v373
        %v467 = vunpack.c.l.b16 %v374
        %v468 = vunpack.c.h.b16 %v374
        %v469 = vunpack.c.l.b16 %v375
        %v470 = vunpack.c.l.b16 %v376
        %v471 = vunpack.c.h.b16 %v376
        %v472 = vunpack.c.l.b16 %v377
        %v473 = vunpack.c.l.b16 %v378
        %v474 = vunpack.c.h.b16 %v378
        %v475 = vunpack.c.l.b16 %v379
        %v476 = vunpack.c.l.b16 %v380
        %v477 = vunpack.c.h.b16 %v380
        %v478 = vunpack.c.l.b16 %v381
        %v479 = vpack.c.b16 %v434, %v431
        %v480 = vpack.c.b16 %v435, %v432
        %v481 = vpack.c.b16 %v436, %v433
        %v482 = vpack.c.b16 %v440, %v437
        %v483 = vpack.c.b16 %v441, %v438
        %v484 = vpack.c.b16 %v442, %v439
        %v485 = vpack.c.b16 %v446, %v443
        %v486 = vpack.c.b16 %v447, %v444
        %v487 = vpack.c.b16 %v448, %v445
        %v488 = vpack.c.b16 %v452, %v449
        %v489 = vpack.c.b16 %v453, %v450
        %v490 = vpack.c.b16 %v454, %v451
        %v491 = vpack.c.b16 %v458, %v455
        %v492 = vpack.c.b16 %v459, %v456
        %v493 = vpack.c.b16 %v460, %v457
        %v494 = vpack.c.b16 %v464, %v461
        %v495 = vpack.c.b16 %v465, %v462
        %v496 = vpack.c.b16 %v466, %v463
        %v497 = vpack.c.b16 %v470, %v467
        %v498 = vpack.c.b16 %v471, %v468
        %v499 = vpack.c.b16 %v472, %v469
        %v500 = vpack.c.b16 %v476, %v473
        %v501 = vpack.c.b16 %v477, %v474
        %v502 = vpack.c.b16 %v478, %v475
        %527 = vmatprep.subr.bf16.mxu0 %v480
        %528 = vmatpush1.bf16.msra.mxu0 %v479
        %529 = vmatprep.subr.bf16.mxu0 %v483
        %530 = vmatpush1.bf16.msra.mxu0 %v482
        %531 = vmatprep.subr.bf16.mxu0 %v486
        %532 = vmatpush1.bf16.msra.mxu0 %v485
        %533 = vmatprep.subr.bf16.mxu0 %v489
        %534 = vmatpush1.bf16.msra.mxu0 %v488
        %535 = vmatprep.subr.bf16.mxu0 %v492
        %536 = vmatpush1.bf16.msra.mxu0 %v491
        %537 = vmatprep.subr.bf16.mxu0 %v495
        %538 = vmatpush1.bf16.msra.mxu0 %v494
        %539 = vmatprep.subr.bf16.mxu0 %v498
        %540 = vmatpush1.bf16.msra.mxu0 %v497
        %541 = vmatprep.subr.bf16.mxu0 %v501
        %542 = vmatpush1.bf16.msra.mxu0 %v500
        %543 = vmatprep.subr.bf16.mxu0 0
        %544 = vmatpush1.bf16.msra.mxu0 0
        %545 = vmatprep.subr.bf16.mxu0 0
        %546 = vmatpush1.bf16.msra.mxu0 0
        %547 = vmatprep.subr.bf16.mxu0 0
        %548 = vmatpush1.bf16.msra.mxu0 0
        %549 = vmatprep.subr.bf16.mxu0 0
        %550 = vmatpush1.bf16.msra.mxu0 0
        %551 = vmatprep.subr.bf16.mxu0 0
        %552 = vmatpush1.bf16.msra.mxu0 0
        %553 = vmatprep.subr.bf16.mxu0 0
        %554 = vmatpush1.bf16.msra.mxu0 0
        %555 = vmatprep.subr.bf16.mxu0 0
        %556 = vmatpush1.bf16.msra.mxu0 0
        %557 = vmatprep.subr.bf16.mxu0 0
        %558 = vmatpush1.bf16.msra.mxu0 0
        %559 = vmatprep.mubr.bf16.mxu0 0
        %560 = vmatmul.mubr.bf16.gmra.mrb[0].mxu0 %v349
        %v561 = vpop.f32.mrb[0].mxu0
        %v562 = vadd.f32 %v387, %v561
        %v563 = vpop.f32.mrb[0].mxu0
        %v564 = vadd.f32 %v391, %v563
        %v565 = vpop.f32.mrb[0].mxu0
        %v566 = vpop.f32.mrb[0].mxu0
        %567 = vdwg.mxu0
        %568 = vmatprep.subr.bf16.mxu0 0
        %569 = vmatpush1.bf16.msra.mxu0 %v481
        %570 = vmatprep.subr.bf16.mxu0 0
        %571 = vmatpush1.bf16.msra.mxu0 %v484
        %572 = vmatprep.subr.bf16.mxu0 0
        %573 = vmatpush1.bf16.msra.mxu0 %v487
        %574 = vmatprep.subr.bf16.mxu0 0
        %575 = vmatpush1.bf16.msra.mxu0 %v490
        %576 = vmatprep.subr.bf16.mxu0 0
        %577 = vmatpush1.bf16.msra.mxu0 %v493
        %578 = vmatprep.subr.bf16.mxu0 0
        %579 = vmatpush1.bf16.msra.mxu0 %v496
        %580 = vmatprep.subr.bf16.mxu0 0
        %581 = vmatpush1.bf16.msra.mxu0 %v499
        %582 = vmatprep.subr.bf16.mxu0 0
        %583 = vmatpush1.bf16.msra.mxu0 %v502
        %584 = vmatprep.subr.bf16.mxu0 0
        %585 = vmatpush1.bf16.msra.mxu0 0
        %586 = vmatprep.subr.bf16.mxu0 0
        %587 = vmatpush1.bf16.msra.mxu0 0
        %588 = vmatprep.subr.bf16.mxu0 0
        %589 = vmatpush1.bf16.msra.mxu0 0
        %590 = vmatprep.subr.bf16.mxu0 0
        %591 = vmatpush1.bf16.msra.mxu0 0
        %592 = vmatprep.subr.bf16.mxu0 0
        %593 = vmatpush1.bf16.msra.mxu0 0
        %594 = vmatprep.subr.bf16.mxu0 0
        %595 = vmatpush1.bf16.msra.mxu0 0
        %596 = vmatprep.subr.bf16.mxu0 0
        %597 = vmatpush1.bf16.msra.mxu0 0
        %598 = vmatprep.subr.bf16.mxu0 0
        %599 = vmatpush1.bf16.msra.mxu0 0
        %600 = vmatprep.mubr.bf16.mxu0 0
        %601 = vmatmul.mubr.bf16.gmra.mrb[0].mxu0 %v349
        %v602 = vpop.f32.mrb[0].mxu0
        %v603 = vadd.f32 %v395, %v602
        %v604 = vpop.f32.mrb[0].mxu0
        %v605 = vpop.f32.mrb[0].mxu0
        %v606 = vpop.f32.mrb[0].mxu0
        %607 = vdwg.mxu0
        %v608 = vpack.c.bf16 %v562, %v562
        %609 = vst [vmem:[%s333] sm:$0xf] %v608
        %v610 = vpack.c.bf16 %v564, %v564
        %611 = vst [vmem:[%s340] sm:$0xf] %v610
        %v612 = vpack.c.bf16 %v603, %v603
        %613 = vst [vmem:[%s347] sm:$0xf] %v612
        %s614 = sand.u32 %s163, 1
        %s615 = scalar_lea.sflag [#allocation4], %s614
        %s616 = sand.u32 %s163, 1
        %s617 = smul.addr %s616, 4
        %s618 = scalar_lea.vmem [#allocation7], %s617
        %s619 = sand.u32 %s29, 1
        %s620 = scalar_lea.sflag [#allocation9], %s619
        %s621 = sand.u32 %s191, 1
        %s622 = smul.addr %s621, 4
        %s623 = scalar_lea.vmem [#allocation8], %s622
        %s624 = sand.u32 %s29, 1
        %s625 = scalar_lea.sflag [#allocation9], %s624
        %s626 = sand.u32 %s219, 1
        %s627 = smul.addr %s626, 4
        %s628 = scalar_lea.vmem [#allocation10], %s627
        // Predicated region
        $region49: #{tpu_custom_call.1} parent=39 // pred_check
          %p629 = pneg %p173
        $region50: #{tpu_custom_call.1} parent=39 // pred_check_branch
          %631 = sbr.rel (%p629) target = $region52
        $region51: #{tpu_custom_call.1} parent=39 // pred_region
          %s633 = ssub.s32 64, 64
          %634 = vsyncadd %s615, %s633
          %s635 = sadd.s32 %s34, %s33
          %s636 = smul.addr %s635, 64
          %s637 = scalar_lea.hbm %s5, %s636
          %s639 = sshll.u32 %s618, 4
          %s640 = int_to_ptr.vmem [resolvable:$true] %s639
          %642 = dma.vmem_to_hbm [thread:$0]  %s640, 64, %s637, %s615
        $region52: #{tpu_custom_call.1} parent=39 // pred_fallthru
          _
        // Predicated region
        $region53: #{tpu_custom_call.1} parent=39 // pred_check
          %p643 = pneg %p201
        $region54: #{tpu_custom_call.1} parent=39 // pred_check_branch
          %645 = sbr.rel (%p643) target = $region56
        $region55: #{tpu_custom_call.1} parent=39 // pred_region
          %s647 = ssub.s32 64, 64
          %648 = vsyncadd %s620, %s647
          %s649 = sadd.s32 %s34, %s33
          %s650 = smul.addr %s649, 64
          %s651 = scalar_lea.hbm %s6, %s650
          %s653 = sshll.u32 %s623, 4
          %s654 = int_to_ptr.vmem [resolvable:$true] %s653
          %656 = dma.vmem_to_hbm [thread:$0]  %s654, 64, %s651, %s620
        $region56: #{tpu_custom_call.1} parent=39 // pred_fallthru
          _
        // Predicated region
        $region57: #{tpu_custom_call.1} parent=39 // pred_check
          %p657 = pneg %p229
        $region58: #{tpu_custom_call.1} parent=39 // pred_check_branch
          %659 = sbr.rel (%p657) target = $region60
        $region59: #{tpu_custom_call.1} parent=39 // pred_region
          %s661 = ssub.s32 64, 64
          %662 = vsyncadd %s625, %s661
          %s663 = sadd.s32 %s34, %s33
          %s664 = smul.addr %s663, 64
          %s665 = scalar_lea.hbm %s7, %s664
          %s667 = sshll.u32 %s628, 4
          %s668 = int_to_ptr.vmem [resolvable:$true] %s667
          %670 = dma.vmem_to_hbm [thread:$0]  %s668, 64, %s665, %s625
        $region60: #{tpu_custom_call.1} parent=39 // pred_fallthru
          _
      $region40: #{tpu_custom_call.1} parent=5 // pred_fallthru
        _
      %p671 = scmp.le.s32.totalorder 2, %s24
      // Predicated region
      $region61: #{tpu_custom_call.1} parent=5 // pred_check
        %p672 = pneg %p671
      $region62: #{tpu_custom_call.1} parent=5 // pred_check_branch
        %674 = sbr.rel (%p672) target = $region64
      $region63: #{tpu_custom_call.1} parent=5 // pred_region
        %s675 = ssub.s32 %s24, 2
        // Predicated region
        $region65: #{tpu_custom_call.1} parent=63 // pred_check
          %p676 = pneg %p179
        $region66: #{tpu_custom_call.1} parent=63 // pred_check_branch
          %678 = sbr.rel (%p676) target = $region68
        $region67: #{tpu_custom_call.1} parent=63 // pred_region
          %s679 = sand.u32 %s164, 1
          %s680 = scalar_lea.sflag [#allocation4], %s679
          %s681 = sand.u32 %s164, 1
          %s682 = smul.addr %s681, 4
          %s683 = scalar_lea.vmem [#allocation7], %s682
          %684 = dma.done %s680, 64
        $region68: #{tpu_custom_call.1} parent=63 // pred_fallthru
          _
        // Predicated region
        $region69: #{tpu_custom_call.1} parent=63 // pred_check
          %p685 = pneg %p207
        $region70: #{tpu_custom_call.1} parent=63 // pred_check_branch
          %687 = sbr.rel (%p685) target = $region72
        $region71: #{tpu_custom_call.1} parent=63 // pred_region
          %s688 = sand.u32 %s30, 1
          %s689 = scalar_lea.sflag [#allocation9], %s688
          %s690 = sand.u32 %s192, 1
          %s691 = smul.addr %s690, 4
          %s692 = scalar_lea.vmem [#allocation8], %s691
          %693 = dma.done %s689, 64
        $region72: #{tpu_custom_call.1} parent=63 // pred_fallthru
          _
        // Predicated region
        $region73: #{tpu_custom_call.1} parent=63 // pred_check
          %p694 = pneg %p235
        $region74: #{tpu_custom_call.1} parent=63 // pred_check_branch
          %696 = sbr.rel (%p694) target = $region76
        $region75: #{tpu_custom_call.1} parent=63 // pred_region
          %s697 = sand.u32 %s30, 1
          %s698 = scalar_lea.sflag [#allocation9], %s697
          %s699 = sand.u32 %s220, 1
          %s700 = smul.addr %s699, 4
          %s701 = scalar_lea.vmem [#allocation10], %s700
          %702 = dma.done %s698, 64
        $region76: #{tpu_custom_call.1} parent=63 // pred_fallthru
          _
      $region64: #{tpu_custom_call.1} parent=5 // pred_fallthru
        _
    $region6: #{tpu_custom_call.1} parent=1 // loop_footer
      %s28 = sadd.s32 1, %s24
    $region7: #{tpu_custom_call.1} parent=1 // loop_footer_branch
      %23 = sbr.rel target = $region3
    $region8: #{tpu_custom_call.1} parent=1 // loop_exit
      _
    %703 = vsyncpa [#allocation3], 1
    %s704 = scalar_lea.sflag [#allocation3], 1
    %705 = vsyncpa %s704, 1
    %706 = vsyncpa [#allocation6], 1
    %707 = vsyncpa [#allocation4], 1
    %s708 = scalar_lea.sflag [#allocation4], 1
    %709 = vsyncpa %s708, 1
    %710 = vsyncpa [#allocation9], 1
    %s711 = scalar_lea.sflag [#allocation9], 1
    %712 = vsyncpa %s711, 1

</llo_original>
